<compile_context>
chip_gen: v7x
topology: tpu7x:2x2x1
jax: 0.10.0
libtpu: 0.0.40
codegen_flags: <defaults>
</compile_context>

<pallas_src>
import functools

import jax
import jax.numpy as jnp
from jax import lax
from jax.experimental import pallas as pl
from jax.experimental.pallas import tpu as pltpu

_LANES = 128
_SUBLANES = 8
MAX_TILE_ELEMS = 1 << 20        # per input block: 4 MiB f32 / 2 MiB bf16 / 1 MiB i8
MAX_COLS = 2048                 # keep accumulator & per-step temporaries bounded
NUM_CORE_SPLITS = 2             # v7x has 2 TensorCores; sequential (harmless) on v5e/v6e
VMEM_LIMIT_BYTES = 48 * 1024 * 1024


def _pick_acc_rows(tile_rows):
    """Largest of {64,32,16,8} dividing tile_rows (else tile_rows itself)."""
    for cand in (64, 32, 16, 8):
        if tile_rows % cand == 0:
            return cand
    return tile_rows


def _mse_kernel(x_ref, t_ref, o_ref, acc_ref, *, total_rows, tile_rows, cols,
                acc_rows):
    """Per-core partial sum of (t - x)^2 over (tile_rows, cols) blocks."""
    c = pl.program_id(0)                     # core split index
    i = pl.program_id(1)                     # block index within this core
    blocks_per_core = pl.num_programs(1)
    block_id = c * blocks_per_core + i       # global (logical) block index

    @pl.when(i == 0)
    def _init():
        acc_ref[...] = jnp.zeros_like(acc_ref)

    d = t_ref[...].astype(jnp.float32) - x_ref[...].astype(jnp.float32)
    sq = d * d
    folds = tile_rows // acc_rows

    def _fold(v):
        # (tile_rows, cols) -> (acc_rows, cols): acc_rows/8 * cols/128
        # independent vreg accumulation chains -> ILP across the 4 VALU slots.
        return v.reshape(folds, acc_rows, cols).sum(axis=0)

    # A block needs masking iff it extends past the last valid row (ragged last
    # block, or a phantom block from rounding blocks up to the 2-way split).
    # Padded tail elements (flatten path) are real zeros and need no masking.
    needs_mask = (block_id + 1) * tile_rows > total_rows

    @pl.when(jnp.logical_not(needs_mask))
    def _steady():
        acc_ref[...] += _fold(sq)

    @pl.when(needs_mask)
    def _boundary():
        valid_rows = total_rows - block_id * tile_rows   # may be <= 0 (phantom)
        row_ids = lax.broadcasted_iota(jnp.int32, (tile_rows, cols), 0)
        sq_m = jnp.where(row_ids < valid_rows, sq, jnp.float32(0.0))
        acc_ref[...] += _fold(sq_m)

    @pl.when(i == blocks_per_core - 1)
    def _finalize():
        o_ref[0, 0] = jnp.sum(acc_ref[...])   # single XLU reduce per core


def my_mse_loss(inp, target, *, max_tile_elems=MAX_TILE_ELEMS):
    """Pallas equivalent of MyMSELOSS.forward: returns a scalar f32 loss."""
    assert inp.shape == target.shape, "input and target must have same shape"
    n = inp.size                      # `num` in the PyTorch module
    assert n > 0

    itemsize = jnp.dtype(inp.dtype).itemsize

    # Present the data as a 2-D (rows, cols) view with cols a multiple of 128.
    # Prefer keeping the original minor dim (collapse leading dims only);
    # otherwise flatten to lanes of 128 with a < 128-element zero pad only when
    # n % 128 != 0.
    if inp.ndim >= 2 and inp.shape[-1] % _LANES == 0 and inp.shape[-1] <= MAX_COLS:
        cols = inp.shape[-1]
        x2 = inp.reshape(-1, cols)
        t2 = target.reshape(-1, cols)
    else:
        cols = _LANES
        x = jnp.ravel(inp)
        t = jnp.ravel(target)
        padded = pl.cdiv(n, cols) * cols
        if padded != n:
            x = jnp.pad(x, (0, padded - n))
            t = jnp.pad(t, (0, padded - n))
        x2 = x.reshape(-1, cols)
        t2 = t.reshape(-1, cols)
    rows = x2.shape[0]

    # Dtype-aware sublane packing: (8,128) f32, (16,128) bf16, (32,128) int8.
    packing = _SUBLANES * max(1, 4 // itemsize)
    budget_rows = max(packing, max_tile_elems // cols)
    if rows <= budget_rows:
        tile_rows = rows                              # single block == full dim
    else:
        tile_rows = max(packing, (budget_rows // packing) * packing)

    total_blocks = pl.cdiv(rows, tile_rows)
    num_splits = NUM_CORE_SPLITS if total_blocks >= 2 else 1
    blocks_per_core = pl.cdiv(total_blocks, num_splits)
    acc_rows = _pick_acc_rows(tile_rows)

    if num_splits * blocks_per_core == total_blocks:
        def in_index(c, i):
            return (c * blocks_per_core + i, 0)
    else:
        # Phantom steps (grid rounded up for the split) are clamped onto the
        # last real block and fully masked in-kernel (contribute 0).
        def in_index(c, i):
            return (jnp.minimum(c * blocks_per_core + i, total_blocks - 1), 0)

    cost = pl.CostEstimate(
        flops=3 * n,
        transcendentals=0,
        bytes_accessed=2 * n * itemsize + 4 * num_splits,
    )

    kern = functools.partial(
        _mse_kernel,
        total_rows=rows,
        tile_rows=tile_rows,
        cols=cols,
        acc_rows=acc_rows,
    )

    partials = pl.pallas_call(
        kern,
        out_shape=jax.ShapeDtypeStruct((num_splits, 1), jnp.float32),
        grid_spec=pltpu.PrefetchScalarGridSpec(
            num_scalar_prefetch=0,
            grid=(num_splits, blocks_per_core),
            in_specs=[
                pl.BlockSpec((tile_rows, cols), in_index),
                pl.BlockSpec((tile_rows, cols), in_index),
            ],
            out_specs=pl.BlockSpec((1, 1), lambda c, i: (c, 0),
                                   memory_space=pltpu.SMEM),
            scratch_shapes=[pltpu.VMEM((acc_rows, cols), jnp.float32)],
        ),
        compiler_params=pltpu.CompilerParams(
            dimension_semantics=("parallel", "arbitrary"),
            vmem_limit_bytes=VMEM_LIMIT_BYTES,
        ),
        cost_estimate=cost,
    )(x2, t2)

    # Mirror `item.mm(item.t()) / num` then `.squeeze()` -> scalar (shape ()).
    return jnp.sum(partials) / jnp.float32(n)


if __name__ == "__main__":
    key = jax.random.PRNGKey(0)
    k1, k2 = jax.random.split(key)

    # Primary: small NCHW input (the module flattens anything).
    x = jax.random.normal(k1, (2, 4, 16, 16), dtype=jnp.float32)
    y = jax.random.normal(k2, (2, 4, 16, 16), dtype=jnp.float32)
    loss = jax.block_until_ready(my_mse_loss(x, y))
    ref = jnp.mean((y - x) ** 2)
    assert loss.shape == ()
    assert jnp.allclose(loss, ref, rtol=2e-5, atol=1e-6), (loss, ref)

    # Ragged flat size (n % 128 != 0 -> tiny pad path).
    xr = jax.random.normal(k1, (3, 5, 7), dtype=jnp.float32)
    yr = jax.random.normal(k2, (3, 5, 7), dtype=jnp.float32)
    loss_r = jax.block_until_ready(my_mse_loss(xr, yr))
    ref_r = jnp.mean((yr - xr) ** 2)
    assert jnp.allclose(loss_r, ref_r, rtol=2e-5, atol=1e-6), (loss_r, ref_r)

    # Multi-block + 2-way core split + ragged/phantom-block masking, forced
    # with a tiny tile budget so the test data stays small.
    xm = jax.random.normal(k1, (2, 3, 60, 100), dtype=jnp.float32)
    ym = jax.random.normal(k2, (2, 3, 60, 100), dtype=jnp.float32)
    loss_m = jax.block_until_ready(my_mse_loss(xm, ym, max_tile_elems=16 * 1024))
    ref_m = jnp.mean((ym - xm) ** 2)
    assert jnp.allclose(loss_m, ref_m, rtol=2e-5, atol=1e-6), (loss_m, ref_m)

    # bf16 inputs (dtype-aware packing path; compute is in f32 in-kernel).
    xb = jax.random.normal(k1, (2, 4, 16, 16), dtype=jnp.bfloat16)
    yb = jax.random.normal(k2, (2, 4, 16, 16), dtype=jnp.bfloat16)
    loss_b = jax.block_until_ready(my_mse_loss(xb, yb))
    ref_b = jnp.mean((yb.astype(jnp.float32) - xb.astype(jnp.float32)) ** 2)
    assert jnp.allclose(loss_b, ref_b, rtol=2e-5, atol=1e-6), (loss_b, ref_b)

    print("KERNEL_OK")
</pallas_src>

<mosaic_0001>
module attributes {stable_mosaic.version = 11 : i64} {
  func.func @_mse_kernel(%arg0: i32, %arg1: i32, %arg2: memref<16x128xf32, #tpu.memory_space<vmem>>, %arg3: memref<16x128xf32, #tpu.memory_space<vmem>>, %arg4: memref<1x1xf32, #tpu.memory_space<smem>>, %arg5: memref<16x128xf32, #tpu.memory_space<vmem>>) attributes {dimension_semantics = [#tpu.dimension_semantics<parallel>, #tpu.dimension_semantics<arbitrary>], iteration_bounds = array<i64: 1, 1>, scalar_prefetch = 0 : i64, scratch_operands = 1 : i64, tpu.core_type = #tpu.core_type<tc>, window_params = [{transform_indices = @transform_0, window_bounds = array<i64: 16, 128>}, {transform_indices = @transform_1, window_bounds = array<i64: 16, 128>}, {transform_indices = @transform_2, window_bounds = array<i64: 1, 1>}]} {
    %c1_i32 = arith.constant 1 : i32
    %0 = arith.muli %arg0, %c1_i32 : i32
    %1 = arith.addi %0, %arg1 : i32
    %c0_i32 = arith.constant 0 : i32
    %2 = arith.cmpi eq, %arg1, %c0_i32 : i32
    %3 = arith.extui %2 : i1 to i32
    %c0_i32_0 = arith.constant 0 : i32
    %4 = arith.cmpi ne, %3, %c0_i32_0 : i32
    scf.if %4 {
      %cst = arith.constant 0.000000e+00 : f32
      %20 = vector.broadcast %cst : f32 to vector<16x128xf32>
      %c0_10 = arith.constant 0 : index
      %c0_11 = arith.constant 0 : index
      %21 = vector.load %arg5[%c0_10, %c0_11] : memref<16x128xf32, #tpu.memory_space<vmem>>, vector<16x128xf32>
      tpu.vector_store %arg5[%c0_10, %c0_11], %20 {strides = array<i32>} : memref<16x128xf32, #tpu.memory_space<vmem>>, vector<16x128xf32>,
    } else {
    }
    %c0 = arith.constant 0 : index
    %c0_1 = arith.constant 0 : index
    %5 = vector.load %arg3[%c0, %c0_1] : memref<16x128xf32, #tpu.memory_space<vmem>>, vector<16x128xf32>
    %c0_2 = arith.constant 0 : index
    %c0_3 = arith.constant 0 : index
    %6 = vector.load %arg2[%c0_2, %c0_3] : memref<16x128xf32, #tpu.memory_space<vmem>>, vector<16x128xf32>
    %7 = arith.subf %5, %6 : vector<16x128xf32>
    %8 = arith.mulf %7, %7 : vector<16x128xf32>
    %c1_i32_4 = arith.constant 1 : i32
    %9 = arith.addi %1, %c1_i32_4 : i32
    %c16_i32 = arith.constant 16 : i32
    %10 = arith.muli %9, %c16_i32 : i32
    %c16_i32_5 = arith.constant 16 : i32
    %11 = arith.cmpi sgt, %10, %c16_i32_5 : i32
    %true = arith.constant true
    %12 = arith.xori %11, %true : i1
    %13 = arith.extui %12 : i1 to i32
    %c0_i32_6 = arith.constant 0 : i32
    %14 = arith.cmpi ne, %13, %c0_i32_6 : i32
    scf.if %14 {
      %c0_10 = arith.constant 0 : index
      %c0_11 = arith.constant 0 : index
      %20 = vector.load %arg5[%c0_10, %c0_11] : memref<16x128xf32, #tpu.memory_space<vmem>>, vector<16x128xf32>
      %21 = vector.shape_cast %8 : vector<16x128xf32> to vector<1x16x128xf32>
      %cst = arith.constant dense<0.000000e+00> : vector<16x128xf32>
      %22 = vector.multi_reduction <add>, %21, %cst [0] : vector<1x16x128xf32> to vector<16x128xf32>
      %23 = arith.addf %20, %22 : vector<16x128xf32>
      %c0_12 = arith.constant 0 : index
      %c0_13 = arith.constant 0 : index
      %24 = vector.load %arg5[%c0_12, %c0_13] : memref<16x128xf32, #tpu.memory_space<vmem>>, vector<16x128xf32>
      tpu.vector_store %arg5[%c0_12, %c0_13], %23 {strides = array<i32>} : memref<16x128xf32, #tpu.memory_space<vmem>>, vector<16x128xf32>,
    } else {
    }
    %15 = arith.extui %11 : i1 to i32
    %c0_i32_7 = arith.constant 0 : i32
    %16 = arith.cmpi ne, %15, %c0_i32_7 : i32
    scf.if %16 {
      %c16_i32_10 = arith.constant 16 : i32
      %20 = arith.muli %1, %c16_i32_10 : i32
      %c16_i32_11 = arith.constant 16 : i32
      %21 = arith.subi %c16_i32_11, %20 : i32
      %22 = tpu.iota {dimensions = array<i32: 0>} : vector<16x128xi32>
      %23 = vector.broadcast %21 : i32 to vector<16x128xi32>
      %24 = arith.cmpi slt, %22, %23 : vector<16x128xi32>
      %cst = arith.constant 0.000000e+00 : f32
      %25 = vector.broadcast %cst : f32 to vector<16x128xf32>
      %26 = arith.select %24, %8, %25 : vector<16x128xi1>, vector<16x128xf32>
      %c0_12 = arith.constant 0 : index
      %c0_13 = arith.constant 0 : index
      %27 = vector.load %arg5[%c0_12, %c0_13] : memref<16x128xf32, #tpu.memory_space<vmem>>, vector<16x128xf32>
      %28 = vector.shape_cast %26 : vector<16x128xf32> to vector<1x16x128xf32>
      %cst_14 = arith.constant dense<0.000000e+00> : vector<16x128xf32>
      %29 = vector.multi_reduction <add>, %28, %cst_14 [0] : vector<1x16x128xf32> to vector<16x128xf32>
      %30 = arith.addf %27, %29 : vector<16x128xf32>
      %c0_15 = arith.constant 0 : index
      %c0_16 = arith.constant 0 : index
      %31 = vector.load %arg5[%c0_15, %c0_16] : memref<16x128xf32, #tpu.memory_space<vmem>>, vector<16x128xf32>
      tpu.vector_store %arg5[%c0_15, %c0_16], %30 {strides = array<i32>} : memref<16x128xf32, #tpu.memory_space<vmem>>, vector<16x128xf32>,
    } else {
    }
    %c0_i32_8 = arith.constant 0 : i32
    %17 = arith.cmpi eq, %arg1, %c0_i32_8 : i32
    %18 = arith.extui %17 : i1 to i32
    %c0_i32_9 = arith.constant 0 : i32
    %19 = arith.cmpi ne, %18, %c0_i32_9 : i32
    scf.if %19 {
      %c0_10 = arith.constant 0 : index
      %c0_11 = arith.constant 0 : index
      %20 = vector.load %arg5[%c0_10, %c0_11] : memref<16x128xf32, #tpu.memory_space<vmem>>, vector<16x128xf32>
      %21 = vector.shape_cast %20 : vector<16x128xf32> to vector<1x16x128xf32>
      %cst = arith.constant dense<0.000000e+00> : vector<1xf32>
      %22 = vector.multi_reduction <add>, %21, %cst [1, 2] : vector<1x16x128xf32> to vector<1xf32>
      %23 = vector.shape_cast %22 : vector<1xf32> to vector<1x1x1xf32>
      %24 = vector.extract %23[0, 0, 0] : f32 from vector<1x1x1xf32>
      %c0_12 = arith.constant 0 : index
      %c0_13 = arith.constant 0 : index
      %25 = memref.load %arg4[%c0_12, %c0_13] : memref<1x1xf32, #tpu.memory_space<smem>>
      memref.store %24, %arg4[%c0_12, %c0_13] : memref<1x1xf32, #tpu.memory_space<smem>>
    } else {
    }
    return
  }
  func.func @transform_0(%arg0: i32, %arg1: i32) -> (i32, i32) {
    %c1_i32 = arith.constant 1 : i32
    %0 = arith.muli %arg0, %c1_i32 : i32
    %1 = arith.addi %0, %arg1 : i32
    %c0_i32 = arith.constant 0 : i32
    %c0_i32_0 = arith.constant 0 : i32
    return %1, %c0_i32 : i32, i32
  }
  func.func @transform_1(%arg0: i32, %arg1: i32) -> (i32, i32) {
    %c1_i32 = arith.constant 1 : i32
    %0 = arith.muli %arg0, %c1_i32 : i32
    %1 = arith.addi %0, %arg1 : i32
    %c0_i32 = arith.constant 0 : i32
    %c0_i32_0 = arith.constant 0 : i32
    return %1, %c0_i32 : i32, i32
  }
  func.func @transform_2(%arg0: i32, %arg1: i32) -> (i32, i32) {
    %c0_i32 = arith.constant 0 : i32
    %c0_i32_0 = arith.constant 0 : i32
    return %arg0, %c0_i32 : i32, i32
  }
}

</mosaic_0001>

<llo_original>
// kernel: tpu_custom_call.1
$region0: #{tpu_custom_call.1}
  #allocation0 [shape = 'u32[]', space=smem, size = 0x4, offset = 0x4, fixed_abs, tag = 'smem constant byte address 0x4 - core index']
  #allocation1 [shape = 'u32[144,128]{1,0:T(1,128)}', space=vmem, size = 0x12000, scoped, tag = 'internal scratch']
  #allocation2 [shape = 'f32[16,128]{1,0:T(8,128)}', space=vmem, size = 0x2000, scoped, tag = 'scratch operand']
  %s0 = inlined_call_operand.hbm [shape: f32[16,128], index: 0, kind: input, shape index: {}]
  %s1 = inlined_call_operand.hbm [shape: f32[16,128], index: 1, kind: input, shape index: {}]
  %s2 = inlined_call_operand.hbm [shape: f32[1,1], index: 2, kind: output, shape index: {}]
  %s3 = sld [smem:[#allocation0]]
  $region42: #{tpu_custom_call.1} parent=0
    _
  %s5 = ssub.s32 1, %s3
  %s6 = scalar_select 0, %s5, %s3
  $region1: #{tpu_custom_call.1} parent=0
    #allocation3 [shape = 'u8[8192]{0}', space=vmem, size = 0x2000, scoped, tag = 'input window, operand 0, single buffered']
    #allocation4 [shape = 's32[1]{0}', space=sflag, size = 0x4, scoped, tag = 'scoped memory for tpu_custom_call.1']
    #allocation5 [shape = 's32[1]{0}', space=sflag, size = 0x4, scoped, tag = 'scoped memory for tpu_custom_call.1']
    #allocation6 [shape = 'u8[8192]{0}', space=vmem, size = 0x2000, scoped, tag = 'input window, operand 1, single buffered']
    #allocation7 [shape = 's32[1]{0}', space=sflag, size = 0x4, scoped, tag = 'scoped memory for tpu_custom_call.1']
    #allocation8 [shape = 'u8[512]{0}', space=smem, size = 0x200, scoped, tag = 'output window, operand 0, single buffered']
    %7 = vsyncpa [#allocation4], 0
    %8 = vsyncpa [#allocation7], 0
    %9 = vsyncpa [#allocation5], 0
    // Predicated region
    $region2: #{tpu_custom_call.1} parent=1 // pred_check
      _
    $region3: #{tpu_custom_call.1} parent=1 // pred_check_branch
      %11 = sbr.rel (0) target = $region5
    $region4: #{tpu_custom_call.1} parent=1 // pred_region
      %s12 = sadd.s32 0, 0
      %s13 = smul.u32 2, %s12
      %s15 = ssub.s32 256, 256
      %16 = vsyncadd [#allocation4], %s15
      %s17 = smul.addr %s13, 128
      %s18 = scalar_lea.hbm %s0, %s17
      %s19 = sshll.u32 [#allocation3], 4
      %s20 = int_to_ptr.vmem [resolvable:$true] %s19
      %25 = dma.hbm_to_vmem [thread:$0]  %s18, 256, %s20, [#allocation4], 128, 128, 8
    $region5: #{tpu_custom_call.1} parent=1 // pred_fallthru
      _
    // Predicated region
    $region6: #{tpu_custom_call.1} parent=1 // pred_check
      _
    $region7: #{tpu_custom_call.1} parent=1 // pred_check_branch
      %27 = sbr.rel (0) target = $region9
    $region8: #{tpu_custom_call.1} parent=1 // pred_region
      %s28 = sadd.s32 0, 0
      %s29 = smul.u32 2, %s28
      %s31 = ssub.s32 256, 256
      %32 = vsyncadd [#allocation7], %s31
      %s33 = smul.addr %s29, 128
      %s34 = scalar_lea.hbm %s1, %s33
      %s35 = sshll.u32 [#allocation6], 4
      %s36 = int_to_ptr.vmem [resolvable:$true] %s35
      %41 = dma.hbm_to_vmem [thread:$0]  %s34, 256, %s36, [#allocation7], 128, 128, 8
    $region9: #{tpu_custom_call.1} parent=1 // pred_fallthru
      _
    // Predicated region
    $region10: #{tpu_custom_call.1} parent=1 // pred_check
      _
    $region11: #{tpu_custom_call.1} parent=1 // pred_check_branch
      %43 = sbr.rel (0) target = $region13
    $region12: #{tpu_custom_call.1} parent=1 // pred_region
      %44 = dma.done [#allocation4], 256
    $region13: #{tpu_custom_call.1} parent=1 // pred_fallthru
      _
    // Predicated region
    $region14: #{tpu_custom_call.1} parent=1 // pred_check
      _
    $region15: #{tpu_custom_call.1} parent=1 // pred_check_branch
      %46 = sbr.rel (0) target = $region17
    $region16: #{tpu_custom_call.1} parent=1 // pred_region
      %47 = dma.done [#allocation7], 256
    $region17: #{tpu_custom_call.1} parent=1 // pred_fallthru
      _
    %s48 = sadd.s32 0, 0
    %s49 = smul.u32 2, %s48
    %s50 = sadd.s32 0, 0
    %s51 = smul.u32 2, %s50
    %s52 = sadd.s32 0, 0
    %p53 = scmp.eq.s32.totalorder 0, 0
    // Predicated region
    $region18: #{tpu_custom_call.1} parent=1 // pred_check
      %p54 = pneg %p53
    $region19: #{tpu_custom_call.1} parent=1 // pred_check_branch
      %56 = sbr.rel (%p54) target = $region21
    $region20: #{tpu_custom_call.1} parent=1 // pred_region
      %57 = vst [vmem:[#allocation2] sm:$0xff] 0.0
      %58 = vst [vmem:[#allocation2 + $0x8] sm:$0xff] 0.0
    $region21: #{tpu_custom_call.1} parent=1 // pred_fallthru
      _
    %v59 = vld [vmem:[#allocation6] sm:$0xff]
    %v60 = vld [vmem:[#allocation6 + $0x8] sm:$0xff]
    %v61 = vld [vmem:[#allocation3] sm:$0xff]
    %v62 = vld [vmem:[#allocation3 + $0x8] sm:$0xff]
    %v63 = vsub.f32 %v59, %v61
    %v64 = vsub.f32 %v60, %v62
    %v65 = vmul.f32 %v63, %v63
    %v66 = vmul.f32 %v64, %v64
    %s67 = sadd.s32 %s52, 1
    %s68 = smul.u32 %s67, 16
    %p69 = scmp.gt.s32.totalorder %s68, 16
    %p70 = scmp.le.s32.totalorder %s68, 16
    // Predicated region
    $region22: #{tpu_custom_call.1} parent=1 // pred_check
      %p71 = pneg %p70
    $region23: #{tpu_custom_call.1} parent=1 // pred_check_branch
      %73 = sbr.rel (%p71) target = $region25
    $region24: #{tpu_custom_call.1} parent=1 // pred_region
      %v74 = vld [vmem:[#allocation2] sm:$0xff]
      %v75 = vld [vmem:[#allocation2 + $0x8] sm:$0xff]
      %v76 = vadd.f32 %v65, 0.0
      %v77 = vadd.f32 %v66, 0.0
      %v78 = vadd.f32 %v74, %v76
      %v79 = vadd.f32 %v75, %v77
      %80 = vst [vmem:[#allocation2] sm:$0xff] %v78
      %81 = vst [vmem:[#allocation2 + $0x8] sm:$0xff] %v79
    $region25: #{tpu_custom_call.1} parent=1 // pred_fallthru
      _
    // Predicated region
    $region26: #{tpu_custom_call.1} parent=1 // pred_check
      %p82 = pneg %p69
    $region27: #{tpu_custom_call.1} parent=1 // pred_check_branch
      %84 = sbr.rel (%p82) target = $region29
    $region28: #{tpu_custom_call.1} parent=1 // pred_region
      %s85 = smul.u32 %s52, 16
      %s86 = ssub.s32 16, %s85
      %v87 = vlaneseq
      %v88 = vshrl.u32 %v87, 7
      %v89 = vadd.s32 %v88, 8
      %v90 = vstv %s86
      %vm91 = vcmp.lt.s32.totalorder %v88, %v90
      %vm92 = vcmp.lt.s32.totalorder %v89, %v90
      %v93 = vsel %vm91, %v65, 0.0
      %v94 = vsel %vm92, %v66, 0.0
      %v95 = vld [vmem:[#allocation2] sm:$0xff]
      %v96 = vld [vmem:[#allocation2 + $0x8] sm:$0xff]
      %v97 = vadd.f32 %v93, 0.0
      %v98 = vadd.f32 %v94, 0.0
      %v99 = vadd.f32 %v95, %v97
      %v100 = vadd.f32 %v96, %v98
      %101 = vst [vmem:[#allocation2] sm:$0xff] %v99
      %102 = vst [vmem:[#allocation2 + $0x8] sm:$0xff] %v100
    $region29: #{tpu_custom_call.1} parent=1 // pred_fallthru
      _
    // Predicated region
    $region30: #{tpu_custom_call.1} parent=1 // pred_check
      %p103 = pneg %p53
    $region31: #{tpu_custom_call.1} parent=1 // pred_check_branch
      %105 = sbr.rel (%p103) target = $region33
    $region32: #{tpu_custom_call.1} parent=1 // pred_region
      %v106 = vld [vmem:[#allocation2] sm:$0xff]
      %v107 = vld [vmem:[#allocation2 + $0x8] sm:$0xff]
      %v108 = vadd.f32 %v106, %v107
      %109 = vadd.xlane.f32.xlu0 %v108
      %v110 = vpop.xlane.xlu0 %109
      %v111 = vrot.slane %v110, 4
      %v112 = vadd.f32 %v110, %v111
      %v113 = vrot.slane %v112, 2
      %v114 = vadd.f32 %v112, %v113
      %v115 = vrot.slane %v114, 1
      %v116 = vadd.f32 %v114, %v115
      %s117 = vtos %v116
      %s118 = scalar_lea.smem [#allocation8], 0
      %119 = sst [smem:[%s118]] %s117
    $region33: #{tpu_custom_call.1} parent=1 // pred_fallthru
      _
    // Predicated region
    $region34: #{tpu_custom_call.1} parent=1 // pred_check
      _
    $region35: #{tpu_custom_call.1} parent=1 // pred_check_branch
      %121 = sbr.rel (0) target = $region37
    $region36: #{tpu_custom_call.1} parent=1 // pred_region
      %s123 = ssub.s32 16, 16
      %124 = vsyncadd [#allocation5], %s123
      %127 = dma.smem_to_hbm [#allocation8], 16, %s2, [#allocation5]
    $region37: #{tpu_custom_call.1} parent=1 // pred_fallthru
      _
    // Predicated region
    $region38: #{tpu_custom_call.1} parent=1 // pred_check
      _
    $region39: #{tpu_custom_call.1} parent=1 // pred_check_branch
      %129 = sbr.rel (0) target = $region41
    $region40: #{tpu_custom_call.1} parent=1 // pred_region
      %130 = dma.done [#allocation5], 16
    $region41: #{tpu_custom_call.1} parent=1 // pred_fallthru
      _
    %131 = sfence
    %132 = vsyncpa [#allocation4], 1
    %133 = vsyncpa [#allocation7], 1
    %134 = vsyncpa [#allocation5], 1

</llo_original>
